<compile_context>
chip_gen: v7x
topology: tpu7x:2x2x1
jax: 0.10.0
libtpu: 0.0.40
codegen_flags: <defaults>
</compile_context>

<pallas_src>
import functools

import jax
import jax.numpy as jnp
from jax.experimental import pallas as pl
from jax.experimental.pallas import tpu as pltpu

LANES = 128
# ~0.5 MiB per input tile: with 2 inputs x 2 pipeline buffers that is ~2 MiB of
# VMEM, safely inside the default scoped limit on v5e/v6e/v7x.
_TILE_BYTES_CAP = 512 * 1024


def _sublanes_for(dtype) -> int:
    # Sub-32-bit dtypes pack along sublanes: f32 -> 8, bf16/f16 -> 16, int8 -> 32.
    return 8 * (4 // jnp.dtype(dtype).itemsize)


def _rmse_kernel(yhat_ref, y_ref, out_ref, acc_ref, *, total_count, eps):
    i = pl.program_id(0)

    @pl.when(i == 0)
    def _():
        acc_ref[...] = jnp.zeros_like(acc_ref)

    # Cast to f32 inside the kernel (required on v5e, free everywhere).
    d = yhat_ref[...].astype(jnp.float32) - y_ref[...].astype(jnp.float32)
    acc_ref[...] += d * d  # pure VPU; per-lane partial sums

    @pl.when(i == pl.num_programs(0) - 1)
    def _():
        sse = jnp.sum(acc_ref[...])              # single XLU reduce at the end
        mse = sse / jnp.float32(total_count)
        out_ref[...] = jnp.sqrt(mse + jnp.float32(eps)).reshape(1, 1)


def rmse_loss(yhat, y, eps=1e-6):
    """Pallas TPU implementation of torch sqrt(MSELoss()(yhat, y) + eps)."""
    assert yhat.shape == y.shape
    total = int(yhat.size)

    # Block sublane multiple / padding chunk derived from the (narrowest) dtype.
    sub = max(_sublanes_for(yhat.dtype), _sublanes_for(y.dtype))
    chunk = sub * LANES

    yhat_f = yhat.reshape(-1)   # keep native dtype (no wrapper upcast)
    y_f = y.reshape(-1)

    padded = pl.cdiv(total, chunk) * chunk
    pad = padded - total
    if pad:
        # Padded entries are identical (0) in both -> diff == 0, so the sum of
        # squared differences is unchanged; the mean divides by `total`.
        # TODO(synk): for large ragged inputs, mask the tail block in-kernel
        # instead of paying this extra HBM pass.
        yhat_f = jnp.pad(yhat_f, (0, pad))
        y_f = jnp.pad(y_f, (0, pad))

    rows = padded // LANES
    yhat2d = yhat_f.reshape(rows, LANES)
    y2d = y_f.reshape(rows, LANES)

    # Largest tile (multiple of `sub`, dividing `rows`) under the byte cap.
    itemsize = max(jnp.dtype(yhat.dtype).itemsize, jnp.dtype(y.dtype).itemsize)
    cap_rows = max(sub, _TILE_BYTES_CAP // (LANES * itemsize))
    units = rows // sub
    t = max(1, min(units, cap_rows // sub))
    while units % t:
        t -= 1
    tm = t * sub
    grid = (rows // tm,)

    # TODO(synk): on v7x, for very large inputs split the row range across the
    # two TensorCores (leading "parallel" axis + per-core partial sums); not
    # worth the extra combine at these sizes.

    kernel = functools.partial(_rmse_kernel, total_count=total, eps=eps)

    out = pl.pallas_call(
        kernel,
        out_shape=jax.ShapeDtypeStruct((1, 1), jnp.float32),
        grid_spec=pltpu.PrefetchScalarGridSpec(
            num_scalar_prefetch=0,
            grid=grid,
            in_specs=[
                pl.BlockSpec((tm, LANES), lambda i: (i, 0)),
                pl.BlockSpec((tm, LANES), lambda i: (i, 0)),
            ],
            out_specs=pl.BlockSpec((1, 1), lambda i: (0, 0)),
            scratch_shapes=[pltpu.VMEM((tm, LANES), jnp.float32)],
        ),
        compiler_params=pltpu.CompilerParams(
            dimension_semantics=("arbitrary",),  # carried accumulator
        ),
    )(yhat2d, y2d)

    return out[0, 0]


if __name__ == "__main__":
    key = jax.random.PRNGKey(0)
    k1, k2, k3, k4 = jax.random.split(key, 4)

    # f32 NCHW-like inputs (matches the module's typical use).
    yhat = jax.random.normal(k1, (2, 4, 16, 16), dtype=jnp.float32)
    y = jax.random.normal(k2, (2, 4, 16, 16), dtype=jnp.float32)
    loss = jax.block_until_ready(rmse_loss(yhat, y))
    ref = jnp.sqrt(jnp.mean((yhat - y) ** 2) + 1e-6)
    assert jnp.allclose(loss, ref, rtol=1e-5, atol=1e-6), (loss, ref)

    # bf16 inputs: no wrapper upcast, cast happens in-kernel.
    yhat_b = jax.random.normal(k3, (2, 4, 16, 16), dtype=jnp.bfloat16)
    y_b = jax.random.normal(k4, (2, 4, 16, 16), dtype=jnp.bfloat16)
    loss_b = jax.block_until_ready(rmse_loss(yhat_b, y_b))
    ref_b = jnp.sqrt(
        jnp.mean((yhat_b.astype(jnp.float32) - y_b.astype(jnp.float32)) ** 2) + 1e-6
    )
    assert jnp.allclose(loss_b, ref_b, rtol=1e-3, atol=1e-3), (loss_b, ref_b)

    # Odd (non-tile-multiple) shape exercises the padding path.
    yhat_o = jax.random.normal(k1, (3, 5, 7), dtype=jnp.float32)
    y_o = jax.random.normal(k2, (3, 5, 7), dtype=jnp.float32)
    loss_o = jax.block_until_ready(rmse_loss(yhat_o, y_o))
    ref_o = jnp.sqrt(jnp.mean((yhat_o - y_o) ** 2) + 1e-6)
    assert jnp.allclose(loss_o, ref_o, rtol=1e-5, atol=1e-6), (loss_o, ref_o)

    print("KERNEL_OK")
</pallas_src>

<mosaic_0001>
module attributes {stable_mosaic.version = 11 : i64} {
  func.func @_rmse_kernel(%arg0: i32, %arg1: memref<16x128xf32, #tpu.memory_space<vmem>>, %arg2: memref<16x128xf32, #tpu.memory_space<vmem>>, %arg3: memref<1x1xf32, #tpu.memory_space<vmem>>, %arg4: memref<16x128xf32, #tpu.memory_space<vmem>>) attributes {dimension_semantics = [#tpu.dimension_semantics<arbitrary>], iteration_bounds = array<i64: 1>, scalar_prefetch = 0 : i64, scratch_operands = 1 : i64, tpu.core_type = #tpu.core_type<tc>, window_params = [{transform_indices = @transform_0, window_bounds = array<i64: 16, 128>}, {transform_indices = @transform_1, window_bounds = array<i64: 16, 128>}, {pipeline_mode = #tpu.pipeline_mode<synchronous>, transform_indices = @transform_2, window_bounds = array<i64: 1, 1>}]} {
    %c0_i32 = arith.constant 0 : i32
    %0 = arith.cmpi eq, %arg0, %c0_i32 : i32
    %1 = arith.extui %0 : i1 to i32
    %c0_i32_0 = arith.constant 0 : i32
    %2 = arith.cmpi ne, %1, %c0_i32_0 : i32
    scf.if %2 {
      %cst = arith.constant 0.000000e+00 : f32
      %13 = vector.broadcast %cst : f32 to vector<16x128xf32>
      %c0_10 = arith.constant 0 : index
      %c0_11 = arith.constant 0 : index
      %14 = vector.load %arg4[%c0_10, %c0_11] : memref<16x128xf32, #tpu.memory_space<vmem>>, vector<16x128xf32>
      tpu.vector_store %arg4[%c0_10, %c0_11], %13 {strides = array<i32>} : memref<16x128xf32, #tpu.memory_space<vmem>>, vector<16x128xf32>,
    } else {
    }
    %c0 = arith.constant 0 : index
    %c0_1 = arith.constant 0 : index
    %3 = vector.load %arg1[%c0, %c0_1] : memref<16x128xf32, #tpu.memory_space<vmem>>, vector<16x128xf32>
    %c0_2 = arith.constant 0 : index
    %c0_3 = arith.constant 0 : index
    %4 = vector.load %arg2[%c0_2, %c0_3] : memref<16x128xf32, #tpu.memory_space<vmem>>, vector<16x128xf32>
    %5 = arith.subf %3, %4 : vector<16x128xf32>
    %c0_4 = arith.constant 0 : index
    %c0_5 = arith.constant 0 : index
    %6 = vector.load %arg4[%c0_4, %c0_5] : memref<16x128xf32, #tpu.memory_space<vmem>>, vector<16x128xf32>
    %7 = arith.mulf %5, %5 : vector<16x128xf32>
    %8 = arith.addf %6, %7 : vector<16x128xf32>
    %c0_6 = arith.constant 0 : index
    %c0_7 = arith.constant 0 : index
    %9 = vector.load %arg4[%c0_6, %c0_7] : memref<16x128xf32, #tpu.memory_space<vmem>>, vector<16x128xf32>
    tpu.vector_store %arg4[%c0_6, %c0_7], %8 {strides = array<i32>} : memref<16x128xf32, #tpu.memory_space<vmem>>, vector<16x128xf32>,
    %c0_i32_8 = arith.constant 0 : i32
    %10 = arith.cmpi eq, %arg0, %c0_i32_8 : i32
    %11 = arith.extui %10 : i1 to i32
    %c0_i32_9 = arith.constant 0 : i32
    %12 = arith.cmpi ne, %11, %c0_i32_9 : i32
    scf.if %12 {
      %c0_10 = arith.constant 0 : index
      %c0_11 = arith.constant 0 : index
      %13 = vector.load %arg4[%c0_10, %c0_11] : memref<16x128xf32, #tpu.memory_space<vmem>>, vector<16x128xf32>
      %14 = vector.shape_cast %13 : vector<16x128xf32> to vector<1x16x128xf32>
      %cst = arith.constant dense<0.000000e+00> : vector<1xf32>
      %15 = vector.multi_reduction <add>, %14, %cst [1, 2] : vector<1x16x128xf32> to vector<1xf32>
      %16 = vector.shape_cast %15 : vector<1xf32> to vector<1x1x1xf32>
      %17 = vector.extract %16[0, 0, 0] : f32 from vector<1x1x1xf32>
      %cst_12 = arith.constant 2.048000e+03 : f32
      %18 = arith.divf %17, %cst_12 : f32
      %cst_13 = arith.constant 9.99999997E-7 : f32
      %19 = arith.addf %18, %cst_13 : f32
      %20 = math.sqrt %19 : f32
      %21 = vector.broadcast %20 : f32 to vector<1x1xf32>
      %c0_14 = arith.constant 0 : index
      %c0_15 = arith.constant 0 : index
      %22 = vector.load %arg3[%c0_14, %c0_15] : memref<1x1xf32, #tpu.memory_space<vmem>>, vector<1x1xf32>
      tpu.vector_store %arg3[%c0_14, %c0_15], %21 {strides = array<i32>} : memref<1x1xf32, #tpu.memory_space<vmem>>, vector<1x1xf32>,
    } else {
    }
    return
  }
  func.func @transform_0(%arg0: i32) -> (i32, i32) {
    %c0_i32 = arith.constant 0 : i32
    %c0_i32_0 = arith.constant 0 : i32
    return %arg0, %c0_i32 : i32, i32
  }
  func.func @transform_1(%arg0: i32) -> (i32, i32) {
    %c0_i32 = arith.constant 0 : i32
    %c0_i32_0 = arith.constant 0 : i32
    return %arg0, %c0_i32 : i32, i32
  }
  func.func @transform_2(%arg0: i32) -> (i32, i32) {
    %c0_i32 = arith.constant 0 : i32
    %c0_i32_0 = arith.constant 0 : i32
    %c0_i32_1 = arith.constant 0 : i32
    return %c0_i32, %c0_i32_0 : i32, i32
  }
}

</mosaic_0001>

<llo_original>
// kernel: tpu_custom_call.1
$region0: #{tpu_custom_call.1}
  #allocation0 [shape = 'u32[]', space=smem, size = 0x4, offset = 0x4, fixed_abs, tag = 'smem constant byte address 0x4 - core index']
  #allocation1 [shape = 'u32[144,128]{1,0:T(1,128)}', space=vmem, size = 0x12000, scoped, tag = 'internal scratch']
  #allocation2 [shape = 'f32[16,128]{1,0:T(8,128)}', space=vmem, size = 0x2000, scoped, tag = 'scratch operand']
  %s0 = inlined_call_operand.hbm [shape: f32[16,128], index: 0, kind: input, shape index: {}]
  %s1 = inlined_call_operand.hbm [shape: f32[16,128], index: 1, kind: input, shape index: {}]
  %s2 = inlined_call_operand.hbm [shape: f32[1,1], index: 2, kind: output, shape index: {}]
  %s3 = sld [smem:[#allocation0]]
  $region34: #{tpu_custom_call.1} parent=0
    _
  %s5 = ssub.s32 1, %s3
  %s6 = scalar_select 0, %s5, %s3
  $region1: #{tpu_custom_call.1} parent=0
    #allocation3 [shape = 'u8[8192]{0}', space=vmem, size = 0x2000, scoped, tag = 'input window, operand 0, single buffered']
    #allocation4 [shape = 's32[1]{0}', space=sflag, size = 0x4, scoped, tag = 'scoped memory for tpu_custom_call.1']
    #allocation5 [shape = 's32[1]{0}', space=sflag, size = 0x4, scoped, tag = 'scoped memory for tpu_custom_call.1']
    #allocation6 [shape = 'u8[8192]{0}', space=vmem, size = 0x2000, scoped, tag = 'input window, operand 1, single buffered']
    #allocation7 [shape = 's32[1]{0}', space=sflag, size = 0x4, scoped, tag = 'scoped memory for tpu_custom_call.1']
    #allocation8 [shape = 'u8[512]{0}', space=vmem, size = 0x400, scoped, tag = 'output window, operand 0, single buffered']
    %7 = vsyncpa [#allocation4], 0
    %8 = vsyncpa [#allocation7], 0
    %9 = vsyncpa [#allocation5], 0
    // Predicated region
    $region2: #{tpu_custom_call.1} parent=1 // pred_check
      _
    $region3: #{tpu_custom_call.1} parent=1 // pred_check_branch
      %11 = sbr.rel (0) target = $region5
    $region4: #{tpu_custom_call.1} parent=1 // pred_region
      %s13 = ssub.s32 256, 256
      %14 = vsyncadd [#allocation4], %s13
      %s15 = sshll.u32 [#allocation3], 4
      %s16 = int_to_ptr.vmem [resolvable:$true] %s15
      %21 = dma.hbm_to_vmem [thread:$0]  %s0, 256, %s16, [#allocation4], 128, 128, 8
    $region5: #{tpu_custom_call.1} parent=1 // pred_fallthru
      _
    // Predicated region
    $region6: #{tpu_custom_call.1} parent=1 // pred_check
      _
    $region7: #{tpu_custom_call.1} parent=1 // pred_check_branch
      %23 = sbr.rel (0) target = $region9
    $region8: #{tpu_custom_call.1} parent=1 // pred_region
      %s25 = ssub.s32 256, 256
      %26 = vsyncadd [#allocation7], %s25
      %s27 = sshll.u32 [#allocation6], 4
      %s28 = int_to_ptr.vmem [resolvable:$true] %s27
      %33 = dma.hbm_to_vmem [thread:$0]  %s1, 256, %s28, [#allocation7], 128, 128, 8
    $region9: #{tpu_custom_call.1} parent=1 // pred_fallthru
      _
    // Predicated region
    $region10: #{tpu_custom_call.1} parent=1 // pred_check
      _
    $region11: #{tpu_custom_call.1} parent=1 // pred_check_branch
      %35 = sbr.rel (0) target = $region13
    $region12: #{tpu_custom_call.1} parent=1 // pred_region
      %36 = dma.done [#allocation4], 256
    $region13: #{tpu_custom_call.1} parent=1 // pred_fallthru
      _
    // Predicated region
    $region14: #{tpu_custom_call.1} parent=1 // pred_check
      _
    $region15: #{tpu_custom_call.1} parent=1 // pred_check_branch
      %38 = sbr.rel (0) target = $region17
    $region16: #{tpu_custom_call.1} parent=1 // pred_region
      %39 = dma.done [#allocation7], 256
    $region17: #{tpu_custom_call.1} parent=1 // pred_fallthru
      _
    %p40 = scmp.eq.s32.totalorder 0, 0
    // Predicated region
    $region18: #{tpu_custom_call.1} parent=1 // pred_check
      %p41 = pneg %p40
    $region19: #{tpu_custom_call.1} parent=1 // pred_check_branch
      %43 = sbr.rel (%p41) target = $region21
    $region20: #{tpu_custom_call.1} parent=1 // pred_region
      %44 = vst [vmem:[#allocation2] sm:$0xff] 0.0
      %45 = vst [vmem:[#allocation2 + $0x8] sm:$0xff] 0.0
    $region21: #{tpu_custom_call.1} parent=1 // pred_fallthru
      _
    %v46 = vld [vmem:[#allocation3] sm:$0xff]
    %v47 = vld [vmem:[#allocation3 + $0x8] sm:$0xff]
    %v48 = vld [vmem:[#allocation6] sm:$0xff]
    %v49 = vld [vmem:[#allocation6 + $0x8] sm:$0xff]
    %v50 = vsub.f32 %v46, %v48
    %v51 = vsub.f32 %v47, %v49
    %v52 = vld [vmem:[#allocation2] sm:$0xff]
    %v53 = vld [vmem:[#allocation2 + $0x8] sm:$0xff]
    %v54 = vmul.f32 %v50, %v50
    %v55 = vmul.f32 %v51, %v51
    %v56 = vadd.f32 %v52, %v54
    %v57 = vadd.f32 %v53, %v55
    %58 = vst [vmem:[#allocation2] sm:$0xff] %v56
    %59 = vst [vmem:[#allocation2 + $0x8] sm:$0xff] %v57
    // Predicated region
    $region22: #{tpu_custom_call.1} parent=1 // pred_check
      %p60 = pneg %p40
    $region23: #{tpu_custom_call.1} parent=1 // pred_check_branch
      %62 = sbr.rel (%p60) target = $region25
    $region24: #{tpu_custom_call.1} parent=1 // pred_region
      %v63 = vld [vmem:[#allocation2] sm:$0xff]
      %v64 = vld [vmem:[#allocation2 + $0x8] sm:$0xff]
      %v65 = vadd.f32 %v63, %v64
      %66 = vadd.xlane.f32.xlu0 %v65
      %v67 = vpop.xlane.xlu0 %66
      %v68 = vrot.slane %v67, 4
      %v69 = vadd.f32 %v67, %v68
      %v70 = vrot.slane %v69, 2
      %v71 = vadd.f32 %v69, %v70
      %v72 = vrot.slane %v71, 1
      %v73 = vadd.f32 %v71, %v72
      %s74 = vtos %v73
      %v75 = vrcp.pop 2048.0
      %s76 = vtos %v75
      %s77 = smul.f32 %s74, %s76
      %s78 = sadd.f32 %s77, 1e-06
      %v79 = vstv %s78
      %v80 = vrsqrt.pop %v79
      %v81 = vmul.f32 %v79, %v80
      %vm82 = vcmp.eq.f32.partialorder %v79, inf
      %v83 = vsel %vm82, %v79, %v81
      %vm84 = vcmp.eq.f32.partialorder %v79, 0.0
      %v85 = vand.u32 %v79, 2147483648
      %v86 = vsel %vm84, %v85, %v83
      %s87 = vtos %v86
      %v88 = vstv %s87
      %vm89 = vcmask 0
      %90 = vst.msk [vmem:[#allocation8] sm:$0x1] %vm89, %v88
    $region25: #{tpu_custom_call.1} parent=1 // pred_fallthru
      _
    // Predicated region
    $region26: #{tpu_custom_call.1} parent=1 // pred_check
      _
    $region27: #{tpu_custom_call.1} parent=1 // pred_check_branch
      %92 = sbr.rel (0) target = $region29
    $region28: #{tpu_custom_call.1} parent=1 // pred_region
      %s94 = ssub.s32 16, 16
      %95 = vsyncadd [#allocation5], %s94
      %s97 = sshll.u32 [#allocation8], 4
      %s98 = int_to_ptr.vmem [resolvable:$true] %s97
      %100 = dma.vmem_to_hbm [thread:$0]  %s98, 16, %s2, [#allocation5]
    $region29: #{tpu_custom_call.1} parent=1 // pred_fallthru
      _
    // Predicated region
    $region30: #{tpu_custom_call.1} parent=1 // pred_check
      _
    $region31: #{tpu_custom_call.1} parent=1 // pred_check_branch
      %102 = sbr.rel (0) target = $region33
    $region32: #{tpu_custom_call.1} parent=1 // pred_region
      %103 = dma.done [#allocation5], 16
    $region33: #{tpu_custom_call.1} parent=1 // pred_fallthru
      _
    %104 = vsyncpa [#allocation4], 1
    %105 = vsyncpa [#allocation7], 1
    %106 = vsyncpa [#allocation5], 1

</llo_original>
